<compile_context>
chip_gen: v6e
topology: v6e:2x2x1
jax: 0.10.0
libtpu: 0.0.40
codegen_flags: <defaults>
</compile_context>

<pallas_src>
import jax
import jax.numpy as jnp
from jax.experimental import pallas as pl
from jax.experimental.pallas import tpu as pltpu

LANE = 128


def _round_up(n, m):
    return ((n + m - 1) // m) * m


def mlp_kernel(x_ref, w1_ref, w2_ref, b2_ref, w3_ref, b3_ref, o_ref):
    """Fused 3-layer MLP on one transposed tile: [F_pad, TILE] -> [1, TILE]."""
    xt = x_ref[...]                                           # [F_pad, TILE] f32

    # Layer 1 on the MXU; b1 is folded into the contraction (column F of w1a
    # multiplies the 1.0 bias row of the X^T tile).  ReLU on the VPU.
    h1 = jnp.dot(w1_ref[...], xt, preferred_element_type=jnp.float32)   # [64, TILE]
    h1 = jnp.maximum(h1, 0.0)

    # Layer 2 on the MXU; bias is a [32, 1] sublane vector broadcast over lanes.
    h2 = jnp.dot(w2_ref[...], h1, preferred_element_type=jnp.float32) + b2_ref[...]
    h2 = jnp.maximum(h2, 0.0)                                 # [32, TILE]

    # Layer 3 has a single output neuron: VPU broadcast multiply + sublane
    # (XLU) reduce instead of a degenerate M=1 MXU pass.
    q = jnp.sum(h2 * w3_ref[...], axis=0, keepdims=True)      # [1, TILE]
    q = q + b3_ref[...]                                       # [1, 1] bias

    o_ref[...] = q.astype(o_ref.dtype)                        # lane-dense store


def simple_feature_qnet(x, params, *, tile_lanes=16384):
    """x: [batch, num_sheets, feature_dim] -> q_values: [batch, num_sheets]."""
    w1, b1, w2, b2, w3, b3 = params
    batch, num_sheets, feature_dim = x.shape
    n_rows = batch * num_sheets
    h1_dim = w1.shape[1]
    h2_dim = w2.shape[1]

    # +1 sublane for the folded layer-1 bias, padded to the 8-sublane tile.
    f_pad = _round_up(feature_dim + 1, 8)

    # Lane tile: multiple of 128, big enough to amortize per-step overhead,
    # capped so the grid has >= 2 steps when there is enough work (v7x megacore).
    n_lanes = _round_up(n_rows, LANE)
    if n_lanes >= 2 * LANE:
        tile = min(tile_lanes, _round_up(n_lanes // 2, LANE))
    else:
        tile = n_lanes
    tile = max(LANE, _round_up(tile, LANE))
    n_pad = _round_up(n_rows, tile)

    # Build X^T: rows 0..F-1 are the features, row F is the 1.0 bias lane,
    # rows F+1..f_pad-1 are zero.  Padded lane columns (>= n_rows) produce
    # garbage q values that are sliced off below.
    x_t = x.reshape(n_rows, feature_dim).T.astype(jnp.float32)          # [F, N]
    x_t = jnp.pad(x_t, ((0, f_pad - feature_dim), (0, n_pad - n_rows)))
    x_t = x_t.at[feature_dim, :].set(1.0)

    # Transposed / augmented weights ([out, in]): contraction over sublanes,
    # row axis stays on lanes.
    w1a = jnp.zeros((h1_dim, f_pad), jnp.float32)
    w1a = w1a.at[:, :feature_dim].set(w1.T.astype(jnp.float32))
    w1a = w1a.at[:, feature_dim].set(b1.reshape(-1).astype(jnp.float32))  # fold b1
    w2t = w2.T.astype(jnp.float32)                          # [32, 64]
    b2t = b2.reshape(h2_dim, 1).astype(jnp.float32)         # [32, 1]
    w3c = w3.reshape(h2_dim, 1).astype(jnp.float32)         # [32, 1]
    b3t = b3.reshape(1, 1).astype(jnp.float32)              # [1, 1]

    grid = (n_pad // tile,)
    const = lambda i: (0, 0)   # weights/biases: VMEM-resident across all steps

    q = pl.pallas_call(
        mlp_kernel,
        out_shape=jax.ShapeDtypeStruct((1, n_pad), jnp.float32),
        grid=grid,
        in_specs=[
            # X^T streams HBM->VMEM, double-buffered by the Pallas pipeline.
            pl.BlockSpec((f_pad, tile), lambda i: (0, i)),
            pl.BlockSpec(w1a.shape, const),
            pl.BlockSpec(w2t.shape, const),
            pl.BlockSpec(b2t.shape, const),
            pl.BlockSpec(w3c.shape, const),
            pl.BlockSpec(b3t.shape, const),
        ],
        out_specs=pl.BlockSpec((1, tile), lambda i: (0, i)),   # lane-dense output
        compiler_params=pltpu.CompilerParams(
            # Lane tiles are independent -> shard across TensorCores on v7x;
            # harmless on single-TC v5e/v6e.
            dimension_semantics=("parallel",),
        ),
    )(x_t, w1a, w2t, b2t, w3c, b3t)

    return q[0, :n_rows].reshape(batch, num_sheets)


def init_params(key, feature_dim=10, hidden_dims=(64, 32)):
    """Deterministic init mimicking nn.Linear (uniform(-1/sqrt(fan_in), +)).
    Weights stored as [in, out]; biases as [1, out]."""
    dims = [feature_dim] + list(hidden_dims) + [1]
    params = []
    for i in range(len(dims) - 1):
        fan_in, fan_out = dims[i], dims[i + 1]
        key, kw, kb = jax.random.split(key, 3)
        bound = 1.0 / jnp.sqrt(fan_in)
        w = jax.random.uniform(kw, (fan_in, fan_out), jnp.float32, -bound, bound)
        b = jax.random.uniform(kb, (1, fan_out), jnp.float32, -bound, bound)
        params += [w, b]
    return tuple(params)


def reference_forward(x, params):
    """Pure-JAX reference: exactly the PyTorch forward pass (f32, highest-prec dots)."""
    w1, b1, w2, b2, w3, b3 = params
    batch, num_sheets, feature_dim = x.shape
    hp = jax.lax.Precision.HIGHEST
    h = x.reshape(-1, feature_dim)
    h1 = jnp.maximum(jnp.dot(h, w1, precision=hp) + b1, 0.0)
    h2 = jnp.maximum(jnp.dot(h1, w2, precision=hp) + b2, 0.0)
    q = jnp.dot(h2, w3, precision=hp) + b3
    return q.reshape(batch, num_sheets)


if __name__ == "__main__":
    key = jax.random.PRNGKey(0)
    k_params, k_x = jax.random.split(key)

    feature_dim = 10
    batch, num_sheets = 2, 8

    params = init_params(k_params, feature_dim=feature_dim, hidden_dims=(64, 32))
    x = jax.random.normal(k_x, (batch, num_sheets, feature_dim), jnp.float32)

    # Small shape (module's toy config): single tile, single grid step.
    q = jax.block_until_ready(simple_feature_qnet(x, params))
    q_ref = reference_forward(x, params)
    assert q.shape == (batch, num_sheets)
    assert jnp.allclose(q, q_ref, atol=5e-3, rtol=5e-3), "small-shape mismatch vs reference"

    # Larger, non-tile-divisible row count exercises lane padding, the multi-step
    # grid and the >=2-grid-step cap (v7x megacore path).
    x_big = jax.random.normal(jax.random.PRNGKey(1), (7, 300, feature_dim), jnp.float32)
    q_big = jax.block_until_ready(simple_feature_qnet(x_big, params))
    q_big_ref = reference_forward(x_big, params)
    assert q_big.shape == (7, 300)
    assert jnp.allclose(q_big, q_big_ref, atol=5e-3, rtol=5e-3), "tiled mismatch vs reference"

    # Small explicit tile forces several grid steps over the same data.
    q_multi = jax.block_until_ready(simple_feature_qnet(x_big, params, tile_lanes=512))
    assert jnp.allclose(q_multi, q_big_ref, atol=5e-3, rtol=5e-3), "multi-step mismatch"

    print("KERNEL_OK")
</pallas_src>

<mosaic_0001>
module attributes {stable_mosaic.version = 11 : i64} {
  func.func @mlp_kernel(%arg0: i32, %arg1: memref<16x128xf32, #tpu.memory_space<vmem>>, %arg2: memref<64x16xf32, #tpu.memory_space<vmem>>, %arg3: memref<32x64xf32, #tpu.memory_space<vmem>>, %arg4: memref<32x1xf32, #tpu.memory_space<vmem>>, %arg5: memref<32x1xf32, #tpu.memory_space<vmem>>, %arg6: memref<1x1xf32, #tpu.memory_space<vmem>>, %arg7: memref<1x128xf32, #tpu.memory_space<vmem>>) attributes {dimension_semantics = [#tpu.dimension_semantics<parallel>], iteration_bounds = array<i64: 1>, scalar_prefetch = 0 : i64, scratch_operands = 0 : i64, tpu.core_type = #tpu.core_type<tc>, window_params = [{transform_indices = @transform_0, window_bounds = array<i64: 16, 128>}, {pipeline_mode = #tpu.pipeline_mode<synchronous>, transform_indices = @transform_1, window_bounds = array<i64: 64, 16>}, {pipeline_mode = #tpu.pipeline_mode<synchronous>, transform_indices = @transform_2, window_bounds = array<i64: 32, 64>}, {pipeline_mode = #tpu.pipeline_mode<synchronous>, transform_indices = @transform_3, window_bounds = array<i64: 32, 1>}, {pipeline_mode = #tpu.pipeline_mode<synchronous>, transform_indices = @transform_4, window_bounds = array<i64: 32, 1>}, {pipeline_mode = #tpu.pipeline_mode<synchronous>, transform_indices = @transform_5, window_bounds = array<i64: 1, 1>}, {transform_indices = @transform_6, window_bounds = array<i64: 1, 128>}]} {
    %c0 = arith.constant 0 : index
    %c0_0 = arith.constant 0 : index
    %0 = vector.load %arg1[%c0, %c0_0] : memref<16x128xf32, #tpu.memory_space<vmem>>, vector<16x128xf32>
    %c0_1 = arith.constant 0 : index
    %c0_2 = arith.constant 0 : index
    %1 = vector.load %arg2[%c0_1, %c0_2] : memref<64x16xf32, #tpu.memory_space<vmem>>, vector<64x16xf32>
    %cst = arith.constant dense<0.000000e+00> : vector<64x128xf32>
    %2 = tpu.matmul %1, %0, %cst {dimension_numbers = #tpu.dot_dimension_numbers<[1], [0], [0], [1], [0, 0, 1, 1], [], []>} : vector<64x16xf32>, vector<16x128xf32>, vector<64x128xf32> -> vector<64x128xf32>
    %cst_3 = arith.constant 0.000000e+00 : f32
    %3 = vector.broadcast %cst_3 : f32 to vector<64x128xf32>
    %4 = arith.maximumf %2, %3 : vector<64x128xf32>
    %c0_4 = arith.constant 0 : index
    %c0_5 = arith.constant 0 : index
    %5 = vector.load %arg3[%c0_4, %c0_5] : memref<32x64xf32, #tpu.memory_space<vmem>>, vector<32x64xf32>
    %cst_6 = arith.constant dense<0.000000e+00> : vector<32x128xf32>
    %6 = tpu.matmul %5, %4, %cst_6 {dimension_numbers = #tpu.dot_dimension_numbers<[1], [0], [0], [1], [0, 0, 1, 1], [], []>} : vector<32x64xf32>, vector<64x128xf32>, vector<32x128xf32> -> vector<32x128xf32>
    %c0_7 = arith.constant 0 : index
    %c0_8 = arith.constant 0 : index
    %7 = vector.load %arg4[%c0_7, %c0_8] : memref<32x1xf32, #tpu.memory_space<vmem>>, vector<32x1xf32>
    %8 = vector.broadcast %7 : vector<32x1xf32> to vector<32x128xf32>
    %9 = arith.addf %6, %8 : vector<32x128xf32>
    %cst_9 = arith.constant 0.000000e+00 : f32
    %10 = vector.broadcast %cst_9 : f32 to vector<32x128xf32>
    %11 = arith.maximumf %9, %10 : vector<32x128xf32>
    %c0_10 = arith.constant 0 : index
    %c0_11 = arith.constant 0 : index
    %12 = vector.load %arg5[%c0_10, %c0_11] : memref<32x1xf32, #tpu.memory_space<vmem>>, vector<32x1xf32>
    %13 = vector.broadcast %12 : vector<32x1xf32> to vector<32x128xf32>
    %14 = arith.mulf %11, %13 : vector<32x128xf32>
    %cst_12 = arith.constant dense<0.000000e+00> : vector<128xf32>
    %15 = vector.multi_reduction <add>, %14, %cst_12 [0] : vector<32x128xf32> to vector<128xf32>
    %16 = vector.shape_cast %15 : vector<128xf32> to vector<1x128xf32>
    %c0_13 = arith.constant 0 : index
    %c0_14 = arith.constant 0 : index
    %17 = vector.load %arg6[%c0_13, %c0_14] : memref<1x1xf32, #tpu.memory_space<vmem>>, vector<1x1xf32>
    %18 = vector.broadcast %17 : vector<1x1xf32> to vector<1x128xf32>
    %19 = arith.addf %16, %18 : vector<1x128xf32>
    %c0_15 = arith.constant 0 : index
    %c0_16 = arith.constant 0 : index
    %20 = vector.load %arg7[%c0_15, %c0_16] : memref<1x128xf32, #tpu.memory_space<vmem>>, vector<1x128xf32>
    tpu.vector_store %arg7[%c0_15, %c0_16], %19 {strides = array<i32>} : memref<1x128xf32, #tpu.memory_space<vmem>>, vector<1x128xf32>,
    return
  }
  func.func @transform_0(%arg0: i32) -> (i32, i32) {
    %c0_i32 = arith.constant 0 : i32
    %c0_i32_0 = arith.constant 0 : i32
    return %c0_i32, %arg0 : i32, i32
  }
  func.func @transform_1(%arg0: i32) -> (i32, i32) {
    %c0_i32 = arith.constant 0 : i32
    %c0_i32_0 = arith.constant 0 : i32
    %c0_i32_1 = arith.constant 0 : i32
    return %c0_i32, %c0_i32_0 : i32, i32
  }
  func.func @transform_2(%arg0: i32) -> (i32, i32) {
    %c0_i32 = arith.constant 0 : i32
    %c0_i32_0 = arith.constant 0 : i32
    %c0_i32_1 = arith.constant 0 : i32
    return %c0_i32, %c0_i32_0 : i32, i32
  }
  func.func @transform_3(%arg0: i32) -> (i32, i32) {
    %c0_i32 = arith.constant 0 : i32
    %c0_i32_0 = arith.constant 0 : i32
    %c0_i32_1 = arith.constant 0 : i32
    return %c0_i32, %c0_i32_0 : i32, i32
  }
  func.func @transform_4(%arg0: i32) -> (i32, i32) {
    %c0_i32 = arith.constant 0 : i32
    %c0_i32_0 = arith.constant 0 : i32
    %c0_i32_1 = arith.constant 0 : i32
    return %c0_i32, %c0_i32_0 : i32, i32
  }
  func.func @transform_5(%arg0: i32) -> (i32, i32) {
    %c0_i32 = arith.constant 0 : i32
    %c0_i32_0 = arith.constant 0 : i32
    %c0_i32_1 = arith.constant 0 : i32
    return %c0_i32, %c0_i32_0 : i32, i32
  }
  func.func @transform_6(%arg0: i32) -> (i32, i32) {
    %c0_i32 = arith.constant 0 : i32
    %c0_i32_0 = arith.constant 0 : i32
    return %c0_i32, %arg0 : i32, i32
  }
}

</mosaic_0001>

<llo_original>
// kernel: tpu_custom_call.1
$region0: #{tpu_custom_call.1}
  #allocation0 [shape = 'u32[]', space=smem, size = 0x4, offset = 0x4, fixed_abs, tag = 'smem constant byte address 0x4 - core index']
  #allocation1 [shape = 'u32[144,128]{1,0:T(1,128)}', space=vmem, size = 0x12000, scoped, tag = 'internal scratch']
  #allocation2 [shape = 'f32[1,1]{1,0:T(1,128)S(1)}', space=vmem, size = 0x200, scoped, tag = 'scoped memory for tpu_custom_call.1']
  %s0 = inlined_call_operand.vmem [shape: f32[16,128], index: 0, kind: input, shape index: {}]
  %s1 = inlined_call_operand.vmem [shape: f32[64,16], index: 1, kind: input, shape index: {}]
  %s2 = inlined_call_operand.vmem [shape: f32[32,64], index: 2, kind: input, shape index: {}]
  %s3 = inlined_call_operand.vmem [shape: f32[32,1], index: 3, kind: input, shape index: {}]
  %s4 = inlined_call_operand.vmem [shape: f32[32,1], index: 4, kind: input, shape index: {}]
  %s5 = inlined_call_operand.<no memory space> [shape: f32[1,1], index: 5, kind: input, shape index: {}]
  %s6 = inlined_call_operand.hbm [shape: f32[1,128], index: 6, kind: output, shape index: {}]
  %s7 = sld [smem:[#allocation0]]
  $region34: #{tpu_custom_call.1} parent=0
    _
  %s9 = ssub.s32 1, %s7
  %s10 = scalar_select 0, %s9, %s7
  %v11 = vstv %s5
  %12 = vst [vmem:[#allocation2] sm:$0x1] %v11
  $region1: #{tpu_custom_call.1} parent=0
    #allocation3 [shape = 'u8[512]{0}', space=vmem, size = 0x400, scoped, tag = 'output window, operand 0, single buffered']
    #allocation4 [shape = 's32[1]{0}', space=sflag, size = 0x4, scoped, tag = 'scoped memory for tpu_custom_call.1']
    %13 = vsyncpa [#allocation4], 0
    // Predicated region
    $region2: #{tpu_custom_call.1} parent=1 // pred_check
      _
    $region3: #{tpu_custom_call.1} parent=1 // pred_check_branch
      %15 = sbr.rel (0) target = $region5
    $region4: #{tpu_custom_call.1} parent=1 // pred_region
      _
    $region5: #{tpu_custom_call.1} parent=1 // pred_fallthru
      _
    // Predicated region
    $region6: #{tpu_custom_call.1} parent=1 // pred_check
      _
    $region7: #{tpu_custom_call.1} parent=1 // pred_check_branch
      %17 = sbr.rel (0) target = $region9
    $region8: #{tpu_custom_call.1} parent=1 // pred_region
      _
    $region9: #{tpu_custom_call.1} parent=1 // pred_fallthru
      _
    // Predicated region
    $region10: #{tpu_custom_call.1} parent=1 // pred_check
      _
    $region11: #{tpu_custom_call.1} parent=1 // pred_check_branch
      %19 = sbr.rel (0) target = $region13
    $region12: #{tpu_custom_call.1} parent=1 // pred_region
      _
    $region13: #{tpu_custom_call.1} parent=1 // pred_fallthru
      _
    // Predicated region
    $region14: #{tpu_custom_call.1} parent=1 // pred_check
      _
    $region15: #{tpu_custom_call.1} parent=1 // pred_check_branch
      %21 = sbr.rel (0) target = $region17
    $region16: #{tpu_custom_call.1} parent=1 // pred_region
      _
    $region17: #{tpu_custom_call.1} parent=1 // pred_fallthru
      _
    // Predicated region
    $region18: #{tpu_custom_call.1} parent=1 // pred_check
      _
    $region19: #{tpu_custom_call.1} parent=1 // pred_check_branch
      %23 = sbr.rel (0) target = $region21
    $region20: #{tpu_custom_call.1} parent=1 // pred_region
      _
    $region21: #{tpu_custom_call.1} parent=1 // pred_fallthru
      _
    // Predicated region
    $region22: #{tpu_custom_call.1} parent=1 // pred_check
      _
    $region23: #{tpu_custom_call.1} parent=1 // pred_check_branch
      %25 = sbr.rel (0) target = $region25
    $region24: #{tpu_custom_call.1} parent=1 // pred_region
      _
    $region25: #{tpu_custom_call.1} parent=1 // pred_fallthru
      _
    %v26 = vld [vmem:[%s0] sm:$0xff]
    %v27 = vld [vmem:[%s0 + $0x8] sm:$0xff]
    %v28 = vld [vmem:[%s1] sm:$0xff]
    %v29 = vld [vmem:[%s1 + $0x8] sm:$0xff]
    %v30 = vld [vmem:[%s1 + $0x10] sm:$0xff]
    %v31 = vld [vmem:[%s1 + $0x18] sm:$0xff]
    %v32 = vld [vmem:[%s1 + $0x20] sm:$0xff]
    %v33 = vld [vmem:[%s1 + $0x28] sm:$0xff]
    %v34 = vld [vmem:[%s1 + $0x30] sm:$0xff]
    %v35 = vld [vmem:[%s1 + $0x38] sm:$0xff]
    %vm36 = vcmask 130048
    %v38 = vsel %vm36, %v28, 0
    %v41 = vsel %vm36, %v29, 0
    %v44 = vsel %vm36, %v30, 0
    %v47 = vsel %vm36, %v31, 0
    %v50 = vsel %vm36, %v32, 0
    %v53 = vsel %vm36, %v33, 0
    %v56 = vsel %vm36, %v34, 0
    %v59 = vsel %vm36, %v35, 0
    %61 = vmatprep.subr.mxu0 0.0
    %62 = vmatpush1.msra.mxu0 0.0
    %63 = vmatprep.subr.mxu0 0.0
    %64 = vmatpush1.msra.mxu0 0.0
    %65 = vmatprep.subr.mxu0 0.0
    %66 = vmatpush1.msra.mxu0 0.0
    %67 = vmatprep.subr.mxu0 0.0
    %68 = vmatpush1.msra.mxu0 0.0
    %69 = vmatprep.subr.mxu0 0.0
    %70 = vmatpush1.msra.mxu0 0.0
    %71 = vmatprep.subr.mxu0 0.0
    %72 = vmatpush1.msra.mxu0 0.0
    %73 = vmatprep.subr.mxu0 0.0
    %74 = vmatpush1.msra.mxu0 0.0
    %75 = vmatprep.subr.mxu0 0.0
    %76 = vmatpush1.msra.mxu0 0.0
    %77 = vmatprep.subr.mxu0 0.0
    %78 = vmatpush1.msra.mxu0 0.0
    %79 = vmatprep.subr.mxu0 0.0
    %80 = vmatpush1.msra.mxu0 0.0
    %81 = vmatprep.subr.mxu0 0.0
    %82 = vmatpush1.msra.mxu0 0.0
    %83 = vmatprep.subr.mxu0 0.0
    %84 = vmatpush1.msra.mxu0 0.0
    %85 = vmatprep.subr.mxu0 0.0
    %86 = vmatpush1.msra.mxu0 0.0
    %87 = vmatprep.subr.mxu0 0.0
    %88 = vmatpush1.msra.mxu0 0.0
    %89 = vmatprep.subr.mxu0 0.0
    %90 = vmatpush1.msra.mxu0 %v27
    %91 = vmatprep.subr.mxu0 0.0
    %92 = vmatpush1.msra.mxu0 %v26
    %93 = vmatprep.subr.mxu0 0.0
    %94 = vmatpush2.msra.mxu0 0.0
    %95 = vmatprep.subr.mxu0 0.0
    %96 = vmatpush2.msra.mxu0 0.0
    %97 = vmatprep.subr.mxu0 0.0
    %98 = vmatpush2.msra.mxu0 0.0
    %99 = vmatprep.subr.mxu0 0.0
    %100 = vmatpush2.msra.mxu0 0.0
    %101 = vmatprep.subr.mxu0 0.0
    %102 = vmatpush2.msra.mxu0 0.0
    %103 = vmatprep.subr.mxu0 0.0
    %104 = vmatpush2.msra.mxu0 0.0
    %105 = vmatprep.subr.mxu0 0.0
    %106 = vmatpush2.msra.mxu0 0.0
    %107 = vmatprep.subr.mxu0 0.0
    %108 = vmatpush2.msra.mxu0 0.0
    %109 = vmatprep.subr.mxu0 0.0
    %110 = vmatpush2.msra.mxu0 0.0
    %111 = vmatprep.subr.mxu0 0.0
    %112 = vmatpush2.msra.mxu0 0.0
    %113 = vmatprep.subr.mxu0 0.0
    %114 = vmatpush2.msra.mxu0 0.0
    %115 = vmatprep.subr.mxu0 0.0
    %116 = vmatpush2.msra.mxu0 0.0
    %117 = vmatprep.subr.mxu0 0.0
    %118 = vmatpush2.msra.mxu0 0.0
    %119 = vmatprep.subr.mxu0 0.0
    %120 = vmatpush2.msra.mxu0 0.0
    %121 = vmatprep.subr.mxu0 0.0
    %122 = vmatpush2.msra.mxu0 0.0
    %123 = vmatprep.subr.mxu0 0.0
    %124 = vmatpush2.msra.mxu0 0.0
    %125 = vmatprep.mubr.f32.mxu0 0.0
    %126 = vmatmul.mubr.f32.gmra.mxu0 %v38
    %v127 = vpop.f32.mrf.mxu0
    %v128 = vadd.f32 0.0, %v127
    %v129 = vpop.f32.mrf.mxu0
    %130 = vmatprep.mubr.f32.mxu0 0.0
    %131 = vmatmul.mubr.f32.gmra.mxu0 %v41
    %v132 = vpop.f32.mrf.mxu0
    %v133 = vadd.f32 0.0, %v132
    %v134 = vpop.f32.mrf.mxu0
    %135 = vmatprep.mubr.f32.mxu0 0.0
    %136 = vmatmul.mubr.f32.gmra.mxu0 %v44
    %v137 = vpop.f32.mrf.mxu0
    %v138 = vadd.f32 0.0, %v137
    %v139 = vpop.f32.mrf.mxu0
    %140 = vmatprep.mubr.f32.mxu0 0.0
    %141 = vmatmul.mubr.f32.gmra.mxu0 %v47
    %v142 = vpop.f32.mrf.mxu0
    %v143 = vadd.f32 0.0, %v142
    %v144 = vpop.f32.mrf.mxu0
    %145 = vmatprep.mubr.f32.mxu0 0.0
    %146 = vmatmul.mubr.f32.gmra.mxu0 %v50
    %v147 = vpop.f32.mrf.mxu0
    %v148 = vadd.f32 0.0, %v147
    %v149 = vpop.f32.mrf.mxu0
    %150 = vmatprep.mubr.f32.mxu0 0.0
    %151 = vmatmul.mubr.f32.gmra.mxu0 %v53
    %v152 = vpop.f32.mrf.mxu0
    %v153 = vadd.f32 0.0, %v152
    %v154 = vpop.f32.mrf.mxu0
    %155 = vmatprep.mubr.f32.mxu0 0.0
    %156 = vmatmul.mubr.f32.gmra.mxu0 %v56
    %v157 = vpop.f32.mrf.mxu0
    %v158 = vadd.f32 0.0, %v157
    %v159 = vpop.f32.mrf.mxu0
    %160 = vmatprep.mubr.f32.mxu0 0.0
    %161 = vmatmul.mubr.f32.gmra.mxu0 %v59
    %v162 = vpop.f32.mrf.mxu0
    %v163 = vadd.f32 0.0, %v162
    %v164 = vpop.f32.mrf.mxu0
    %165 = vdwg.mxu0
    %v166 = vmax.f32 %v128, 0.0
    %v167 = vmax.f32 %v133, 0.0
    %v168 = vmax.f32 %v138, 0.0
    %v169 = vmax.f32 %v143, 0.0
    %v170 = vmax.f32 %v148, 0.0
    %v171 = vmax.f32 %v153, 0.0
    %v172 = vmax.f32 %v158, 0.0
    %v173 = vmax.f32 %v163, 0.0
    %v174 = vld [vmem:[%s2] sm:$0xff]
    %v175 = vld [vmem:[%s2 + $0x8] sm:$0xff]
    %v176 = vld [vmem:[%s2 + $0x10] sm:$0xff]
    %v177 = vld [vmem:[%s2 + $0x18] sm:$0xff]
    %v178 = vld [vmem:[%s3] sm:$0xff]
    %v179 = vld [vmem:[%s3 + $0x8] sm:$0xff]
    %v180 = vld [vmem:[%s3 + $0x10] sm:$0xff]
    %v181 = vld [vmem:[%s3 + $0x18] sm:$0xff]
    %183 = vset.pattern.permute.xlu0 0
    %184 = vperm.xlu0 %183, %v178
    %v185 = vpop.permute.xlu0 %184
    %188 = vset.pattern.permute.xlu0 0
    %189 = vperm.xlu0 %188, %v179
    %v190 = vpop.permute.xlu0 %189
    %193 = vset.pattern.permute.xlu0 0
    %194 = vperm.xlu0 %193, %v180
    %v195 = vpop.permute.xlu0 %194
    %198 = vset.pattern.permute.xlu0 0
    %199 = vperm.xlu0 %198, %v181
    %v200 = vpop.permute.xlu0 %199
    %vm202 = vcmask 523264
    %v204 = vsel %vm202, %v174, 0
    %v207 = vsel %vm202, %v175, 0
    %v210 = vsel %vm202, %v176, 0
    %v213 = vsel %vm202, %v177, 0
    %215 = vmatprep.subr.mxu0 0.0
    %216 = vmatpush1.msra.mxu0 0.0
    %217 = vmatprep.subr.mxu0 0.0
    %218 = vmatpush1.msra.mxu0 0.0
    %219 = vmatprep.subr.mxu0 0.0
    %220 = vmatpush1.msra.mxu0 0.0
    %221 = vmatprep.subr.mxu0 0.0
    %222 = vmatpush1.msra.mxu0 0.0
    %223 = vmatprep.subr.mxu0 0.0
    %224 = vmatpush1.msra.mxu0 0.0
    %225 = vmatprep.subr.mxu0 0.0
    %226 = vmatpush1.msra.mxu0 0.0
    %227 = vmatprep.subr.mxu0 0.0
    %228 = vmatpush1.msra.mxu0 0.0
    %229 = vmatprep.subr.mxu0 0.0
    %230 = vmatpush1.msra.mxu0 0.0
    %231 = vmatprep.subr.mxu0 0.0
    %232 = vmatpush1.msra.mxu0 %v173
    %233 = vmatprep.subr.mxu0 0.0
    %234 = vmatpush1.msra.mxu0 %v172
    %235 = vmatprep.subr.mxu0 0.0
    %236 = vmatpush1.msra.mxu0 %v171
    %237 = vmatprep.subr.mxu0 0.0
    %238 = vmatpush1.msra.mxu0 %v170
    %239 = vmatprep.subr.mxu0 0.0
    %240 = vmatpush1.msra.mxu0 %v169
    %241 = vmatprep.subr.mxu0 0.0
    %242 = vmatpush1.msra.mxu0 %v168
    %243 = vmatprep.subr.mxu0 0.0
    %244 = vmatpush1.msra.mxu0 %v167
    %245 = vmatprep.subr.mxu0 0.0
    %246 = vmatpush1.msra.mxu0 %v166
    %247 = vmatprep.subr.mxu0 0.0
    %248 = vmatpush2.msra.mxu0 0.0
    %249 = vmatprep.subr.mxu0 0.0
    %250 = vmatpush2.msra.mxu0 0.0
    %251 = vmatprep.subr.mxu0 0.0
    %252 = vmatpush2.msra.mxu0 0.0
    %253 = vmatprep.subr.mxu0 0.0
    %254 = vmatpush2.msra.mxu0 0.0
    %255 = vmatprep.subr.mxu0 0.0
    %256 = vmatpush2.msra.mxu0 0.0
    %257 = vmatprep.subr.mxu0 0.0
    %258 = vmatpush2.msra.mxu0 0.0
    %259 = vmatprep.subr.mxu0 0.0
    %260 = vmatpush2.msra.mxu0 0.0
    %261 = vmatprep.subr.mxu0 0.0
    %262 = vmatpush2.msra.mxu0 0.0
    %263 = vmatprep.subr.mxu0 0.0
    %264 = vmatpush2.msra.mxu0 0.0
    %265 = vmatprep.subr.mxu0 0.0
    %266 = vmatpush2.msra.mxu0 0.0
    %267 = vmatprep.subr.mxu0 0.0
    %268 = vmatpush2.msra.mxu0 0.0
    %269 = vmatprep.subr.mxu0 0.0
    %270 = vmatpush2.msra.mxu0 0.0
    %271 = vmatprep.subr.mxu0 0.0
    %272 = vmatpush2.msra.mxu0 0.0
    %273 = vmatprep.subr.mxu0 0.0
    %274 = vmatpush2.msra.mxu0 0.0
    %275 = vmatprep.subr.mxu0 0.0
    %276 = vmatpush2.msra.mxu0 0.0
    %277 = vmatprep.subr.mxu0 0.0
    %278 = vmatpush2.msra.mxu0 0.0
    %279 = vmatprep.mubr.f32.mxu0 0.0
    %280 = vmatmul.mubr.f32.gmra.mxu0 %v204
    %v281 = vpop.f32.mrf.mxu0
    %v282 = vadd.f32 %v185, %v281
    %v283 = vpop.f32.mrf.mxu0
    %284 = vmatprep.mubr.f32.mxu0 0.0
    %285 = vmatmul.mubr.f32.gmra.mxu0 %v207
    %v286 = vpop.f32.mrf.mxu0
    %v287 = vadd.f32 %v190, %v286
    %v288 = vpop.f32.mrf.mxu0
    %289 = vmatprep.mubr.f32.mxu0 0.0
    %290 = vmatmul.mubr.f32.gmra.mxu0 %v210
    %v291 = vpop.f32.mrf.mxu0
    %v292 = vadd.f32 %v195, %v291
    %v293 = vpop.f32.mrf.mxu0
    %294 = vmatprep.mubr.f32.mxu0 0.0
    %295 = vmatmul.mubr.f32.gmra.mxu0 %v213
    %v296 = vpop.f32.mrf.mxu0
    %v297 = vadd.f32 %v200, %v296
    %v298 = vpop.f32.mrf.mxu0
    %299 = vdwg.mxu0
    %v300 = vmax.f32 %v282, 0.0
    %v301 = vmax.f32 %v287, 0.0
    %v302 = vmax.f32 %v292, 0.0
    %v303 = vmax.f32 %v297, 0.0
    %v304 = vld [vmem:[%s4] sm:$0xff]
    %v305 = vld [vmem:[%s4 + $0x8] sm:$0xff]
    %v306 = vld [vmem:[%s4 + $0x10] sm:$0xff]
    %v307 = vld [vmem:[%s4 + $0x18] sm:$0xff]
    %309 = vset.pattern.permute.xlu0 0
    %310 = vperm.xlu0 %309, %v304
    %v311 = vpop.permute.xlu0 %310
    %314 = vset.pattern.permute.xlu0 0
    %315 = vperm.xlu0 %314, %v305
    %v316 = vpop.permute.xlu0 %315
    %319 = vset.pattern.permute.xlu0 0
    %320 = vperm.xlu0 %319, %v306
    %v321 = vpop.permute.xlu0 %320
    %324 = vset.pattern.permute.xlu0 0
    %325 = vperm.xlu0 %324, %v307
    %v326 = vpop.permute.xlu0 %325
    %v328 = vmul.f32 %v300, %v311
    %v329 = vmul.f32 %v301, %v316
    %v330 = vmul.f32 %v302, %v321
    %v331 = vmul.f32 %v303, %v326
    %v332 = vadd.f32 %v328, %v329
    %v333 = vadd.f32 %v332, %v330
    %v334 = vadd.f32 %v333, %v331
    %v335 = vrot.slane %v334, 4
    %v336 = vadd.f32 %v334, %v335
    %v337 = vrot.slane %v336, 2
    %v338 = vadd.f32 %v336, %v337
    %v339 = vrot.slane %v338, 1
    %v340 = vadd.f32 %v338, %v339
    %v341 = vld [vmem:[#allocation2] sm:$0x1]
    %343 = vset.pattern.permute.xlu0 0
    %344 = vperm.xlu0 %343, %v341
    %v345 = vpop.permute.xlu0 %344
    %v347 = vlaneseq
    %v348 = vshrl.u32 %v347, 7
    %v349 = vsub.s32 0, %v348
    %v350 = vrot.slane %v345, %v349
    %v351 = vadd.f32 %v340, %v350
    %352 = vst [vmem:[#allocation3] sm:$0x1] %v351
    // Predicated region
    $region26: #{tpu_custom_call.1} parent=1 // pred_check
      _
    $region27: #{tpu_custom_call.1} parent=1 // pred_check_branch
      %354 = sbr.rel (0) target = $region29
    $region28: #{tpu_custom_call.1} parent=1 // pred_region
      %s356 = ssub.s32 16, 16
      %357 = vsyncadd [#allocation4], %s356
      %s359 = sshll.u32 [#allocation3], 4
      %s360 = int_to_ptr.vmem [resolvable:$true] %s359
      %362 = dma.vmem_to_hbm [thread:$0]  %s360, 16, %s6, [#allocation4]
    $region29: #{tpu_custom_call.1} parent=1 // pred_fallthru
      _
    // Predicated region
    $region30: #{tpu_custom_call.1} parent=1 // pred_check
      _
    $region31: #{tpu_custom_call.1} parent=1 // pred_check_branch
      %364 = sbr.rel (0) target = $region33
    $region32: #{tpu_custom_call.1} parent=1 // pred_region
      %365 = dma.done [#allocation4], 16
    $region33: #{tpu_custom_call.1} parent=1 // pred_fallthru
      _
    %366 = vsyncpa [#allocation4], 1

</llo_original>
